<compile_context>
chip_gen: v6e
topology: v6e:2x2x1
jax: 0.10.0
libtpu: 0.0.40
codegen_flags: <defaults>
</compile_context>

<pallas_src>
import numpy as np
import jax
import jax.numpy as jnp
from jax.experimental import pallas as pl
from jax.experimental.pallas import tpu as pltpu


def build_grid(resolution):
    """Identical to the reference numpy helper: (1, H, W, 2*len(resolution))."""
    ranges = [np.linspace(0.0, 1.0, num=res) for res in resolution]
    grid = np.meshgrid(*ranges, sparse=False, indexing="ij")
    grid = np.stack(grid, axis=-1)
    grid = np.reshape(grid, [resolution[0], resolution[1], -1])
    grid = np.expand_dims(grid, axis=0)
    grid = grid.astype(np.float32)
    return np.concatenate([grid, 1.0 - grid], axis=-1)


# --------------------------------------------------------------------------
# Broadcast-add kernel: o = x + pos (pos broadcast over the batch axis).
# pos_ref: (br, lanes); x_ref / o_ref: (1, br, lanes).
# Accumulate in f32, cast back to the input dtype.
# --------------------------------------------------------------------------
def _add_pos_kernel(pos_ref, x_ref, o_ref):
    o_ref[...] = (
        x_ref[...].astype(jnp.float32) + pos_ref[...].astype(jnp.float32)[None]
    ).astype(o_ref.dtype)


def _pick_block_rows(rows, lanes, dtype, cap_bytes=2 * 1024 * 1024):
    """Pick a row-block size:
      * multiple of the dtype's sublane packing (8 f32 / 16 bf16 / 32 int8),
      * block <= ~cap_bytes,
      * divides `rows` exactly,
      * prefers an even block count >= 2 (v7x: both TensorCores balanced),
        then >= 2 blocks, then the largest aligned divisor.
    Falls back to a single full-rows block when no aligned divisor exists."""
    itemsize = jnp.dtype(dtype).itemsize
    sub = max(8, 32 // itemsize)
    if rows <= sub:
        return rows  # full (tiny) second-to-last dim is always legal
    cap = max(sub, cap_bytes // (lanes * itemsize))
    cap -= cap % sub
    cands = [d for d in range(sub, min(rows, cap) + 1, sub) if rows % d == 0]
    if not cands:
        # TODO(synk): no aligned divisor -> one full block; could use partial
        # (cdiv) blocks instead for very large, awkward row counts.
        return rows
    ge2 = [d for d in cands if rows // d >= 2]
    even = [d for d in ge2 if (rows // d) % 2 == 0]
    if even:
        return max(even)
    if ge2:
        return max(ge2)
    return max(cands)


def soft_position_embed(inputs, pos_grid, weight, bias):
    """inputs: (B, H, W, C); pos_grid: (1, H, W, K);
    weight: (K, C) (transpose of torch's (C, K)); bias: (C,).
    Returns inputs + pos_grid @ weight + bias (broadcast over batch)."""
    B, H, W, C = inputs.shape
    HW = H * W
    K = pos_grid.shape[-1]

    # ---- pos = grid @ W + b: batch-invariant and tiny (HW x C), computed
    # once with plain XLA (no separate Pallas launch). ----
    pos = (
        jnp.dot(
            pos_grid.reshape(HW, K).astype(jnp.float32),
            weight.astype(jnp.float32),
            preferred_element_type=jnp.float32,
        )
        + bias.astype(jnp.float32)[None, :]
    )

    # Store pos at the activation width when inputs are a narrow float
    # (halves the single pos HBM fetch and its VMEM footprint).
    if jnp.issubdtype(inputs.dtype, jnp.floating) and jnp.dtype(inputs.dtype).itemsize < 4:
        pos = pos.astype(inputs.dtype)

    # ---- Choose a lane-dense flattened layout when possible. ----
    if (HW * C) % 128 == 0:
        rows, lanes = (HW * C) // 128, 128
    else:
        # TODO(synk): C < 128 here means masked (lane-sparse) stores.
        rows, lanes = HW, C

    x2 = inputs.reshape(B, rows, lanes)
    pos2 = pos.reshape(rows, lanes)

    br = _pick_block_rows(rows, lanes, inputs.dtype)
    num_jb = rows // br

    out = pl.pallas_call(
        _add_pos_kernel,
        out_shape=jax.ShapeDtypeStruct((B, rows, lanes), inputs.dtype),
        # Row-block OUTER, batch INNER: the pos block index only changes with
        # j, so each pos block is DMA'd once and reused across all B steps.
        grid=(num_jb, B),
        in_specs=[
            pl.BlockSpec((br, lanes), lambda j, b: (j, 0)),        # pos
            pl.BlockSpec((1, br, lanes), lambda j, b: (b, j, 0)),  # x
        ],
        out_specs=pl.BlockSpec((1, br, lanes), lambda j, b: (b, j, 0)),
        compiler_params=pltpu.CompilerParams(
            dimension_semantics=("parallel", "arbitrary"),
            vmem_limit_bytes=32 * 1024 * 1024,
        ),
    )(pos2, x2)
    return out.reshape(B, H, W, C)


if __name__ == "__main__":
    # Small, module-consistent shapes.
    resolution = (16, 16)
    hidden_size = 32
    batch = 2
    input_dim = 2 * len(resolution)  # build_grid emits 4 channels for 2D res

    key = jax.random.PRNGKey(0)
    k_w, k_b, k_x = jax.random.split(key, 3)

    # nn.Linear(input_dim, hidden_size): torch weight is (hidden, in);
    # we store its transpose (in, hidden).
    bound = 1.0 / np.sqrt(input_dim)
    weight = jax.random.uniform(
        k_w, (input_dim, hidden_size), jnp.float32, -bound, bound
    )
    bias = jax.random.uniform(k_b, (hidden_size,), jnp.float32, -bound, bound)

    pos_grid = jnp.asarray(build_grid(resolution))  # (1, 16, 16, 4)
    inputs = jax.random.normal(
        k_x, (batch, resolution[0], resolution[1], hidden_size), jnp.float32
    )

    out = soft_position_embed(inputs, pos_grid, weight, bias)
    out = jax.block_until_ready(out)

    # Reference check in plain JAX.
    ref = inputs + (jnp.einsum("bhwk,kc->bhwc", pos_grid, weight) + bias)
    np.testing.assert_allclose(np.asarray(out), np.asarray(ref), rtol=1e-5, atol=1e-5)

    print("KERNEL_OK")
</pallas_src>

<mosaic_0001>
module attributes {stable_mosaic.version = 11 : i64} {
  func.func @_add_pos_kernel(%arg0: i32, %arg1: i32, %arg2: memref<32x128xf32, #tpu.memory_space<vmem>>, %arg3: memref<1x32x128xf32, #tpu.memory_space<vmem>>, %arg4: memref<1x32x128xf32, #tpu.memory_space<vmem>>) attributes {dimension_semantics = [#tpu.dimension_semantics<parallel>, #tpu.dimension_semantics<arbitrary>], iteration_bounds = array<i64: 2, 2>, scalar_prefetch = 0 : i64, scratch_operands = 0 : i64, tpu.core_type = #tpu.core_type<tc>, window_params = [{transform_indices = @transform_0, window_bounds = array<i64: 32, 128>}, {transform_indices = @transform_1, window_bounds = array<i64: 1, 32, 128>}, {transform_indices = @transform_2, window_bounds = array<i64: 1, 32, 128>}]} {
    %c0 = arith.constant 0 : index
    %c0_0 = arith.constant 0 : index
    %c0_1 = arith.constant 0 : index
    %0 = vector.load %arg3[%c0, %c0_0, %c0_1] : memref<1x32x128xf32, #tpu.memory_space<vmem>>, vector<1x32x128xf32>
    %c0_2 = arith.constant 0 : index
    %c0_3 = arith.constant 0 : index
    %1 = vector.load %arg2[%c0_2, %c0_3] : memref<32x128xf32, #tpu.memory_space<vmem>>, vector<32x128xf32>
    %2 = vector.shape_cast %1 : vector<32x128xf32> to vector<1x32x128xf32>
    %3 = arith.addf %0, %2 : vector<1x32x128xf32>
    %c0_4 = arith.constant 0 : index
    %c0_5 = arith.constant 0 : index
    %c0_6 = arith.constant 0 : index
    %4 = vector.load %arg4[%c0_4, %c0_5, %c0_6] : memref<1x32x128xf32, #tpu.memory_space<vmem>>, vector<1x32x128xf32>
    tpu.vector_store %arg4[%c0_4, %c0_5, %c0_6], %3 {strides = array<i32>} : memref<1x32x128xf32, #tpu.memory_space<vmem>>, vector<1x32x128xf32>,
    return
  }
  func.func @transform_0(%arg0: i32, %arg1: i32) -> (i32, i32) {
    %c0_i32 = arith.constant 0 : i32
    %c0_i32_0 = arith.constant 0 : i32
    return %arg0, %c0_i32 : i32, i32
  }
  func.func @transform_1(%arg0: i32, %arg1: i32) -> (i32, i32, i32) {
    %c0_i32 = arith.constant 0 : i32
    %c0_i32_0 = arith.constant 0 : i32
    return %arg1, %arg0, %c0_i32 : i32, i32, i32
  }
  func.func @transform_2(%arg0: i32, %arg1: i32) -> (i32, i32, i32) {
    %c0_i32 = arith.constant 0 : i32
    %c0_i32_0 = arith.constant 0 : i32
    return %arg1, %arg0, %c0_i32 : i32, i32, i32
  }
}

</mosaic_0001>

<llo_original>
// kernel: tpu_custom_call.1
$region0: #{tpu_custom_call.1}
  #allocation0 [shape = 'u32[]', space=smem, size = 0x4, offset = 0x4, fixed_abs, tag = 'smem constant byte address 0x4 - core index']
  #allocation1 [shape = 'u32[144,128]{1,0:T(1,128)}', space=vmem, size = 0x12000, scoped, tag = 'internal scratch']
  %s0 = inlined_call_operand.hbm [shape: f32[64,128], index: 0, kind: input, shape index: {}]
  %s1 = inlined_call_operand.hbm [shape: f32[2,64,128], index: 1, kind: input, shape index: {}]
  %s2 = inlined_call_operand.hbm [shape: f32[2,64,128], index: 2, kind: output, shape index: {}]
  %s3 = sld [smem:[#allocation0]]
  $region49: #{tpu_custom_call.1} parent=0
    _
  %s5 = ssub.s32 1, %s3
  %s6 = scalar_select 0, %s5, %s3
  $region1: #{tpu_custom_call.1} parent=0
    #allocation2 [shape = 'u8[32768]{0}', space=vmem, size = 0x8000, scoped, tag = 'input window, operand 0']
    #allocation3 [shape = 's32[2]{0}', space=sflag, size = 0x8, scoped, tag = 'scoped memory for tpu_custom_call.1']
    #allocation4 [shape = 's32[2]{0}', space=sflag, size = 0x8, scoped, tag = 'scoped memory for tpu_custom_call.1']
    #allocation5 [shape = 'u8[32768]{0}', space=vmem, size = 0x8000, scoped, tag = 'input window, operand 1']
    #allocation6 [shape = 's32[2]{0}', space=sflag, size = 0x8, scoped, tag = 'scoped memory for tpu_custom_call.1']
    #allocation7 [shape = 'u8[32768]{0}', space=vmem, size = 0x8000, scoped, tag = 'output window, operand 0']
    %7 = vsyncpa [#allocation3], 0
    %s8 = scalar_lea.sflag [#allocation3], 1
    %9 = vsyncpa %s8, 0
    %10 = vsyncpa [#allocation6], 0
    %s11 = scalar_lea.sflag [#allocation6], 1
    %12 = vsyncpa %s11, 0
    %13 = vsyncpa [#allocation4], 0
    %s14 = scalar_lea.sflag [#allocation4], 1
    %15 = vsyncpa %s14, 0
    loop: start=0, step=1, limit=6
    $region2: #{tpu_custom_call.1} parent=1 // loop_pre_header
      _
    $region3: #{tpu_custom_call.1} parent=1 // loop_header
      %s17 = sphi 0, %s21
      %p18 = scmp.ge.s32.totalorder %s17, 6
      %s24 = sphi 0, %s36
      %s25 = sphi 0, %s32
      %s26 = sphi 0, %s24
      %s27 = sphi 0, %s25
      %s28 = sphi 0, %s26
      %s29 = sphi 0, %s27
      %s39 = sphi 0, %s41
      %s42 = sphi 0, %s39
      %s43 = sphi 0, %s42
      %s59 = sphi 0, %s43
      %s67 = sphi 0, %s69
      %s70 = sphi 0, %s67
      %s71 = sphi 0, %s70
      %s87 = sphi 0, %s71
      %s95 = sphi 0, %s97
      %s98 = sphi 0, %s95
      %s99 = sphi 0, %s98
      %s115 = sphi 0, %s99
    $region4: #{tpu_custom_call.1} parent=1 // loop_header_branch
      %20 = sbr.rel (%p18) target = $region8
    $region5: #{tpu_custom_call.1} parent=1 // loop_body
      %s22 = ssub.s32 %s17, 1
      %s23 = ssub.s32 %s17, 2
      %s30 = sadd.s32 1, %s25
      %p31 = scmp.ge.s32.totalorder %s30, 2
      %s32 = scalar_select %p31, 0, %s30
      %s33 = sadd.s32 1, %s24
      %s34 = scalar_select %p31, %s33, %s24
      %p35 = scmp.ge.s32.totalorder %s34, 2
      %s36 = scalar_select %p35, 0, %s34
      %s37 = ssub.s32 %s24, %s36
      %p38 = scmp.eq.s32.totalorder %s37, 0
      %s40 = sadd.s32 %s39, 1
      %s41 = scalar_select %p38, %s39, %s40
      %p44 = pneg %p38
      %p45 = scmp.eq.s32.totalorder %s17, 3
      %p46 = por %p44, %p45
      %p47 = scmp.ne.s32.totalorder %s39, %s42
      %p48 = scmp.eq.s32.totalorder %s17, 0
      %p49 = por %p47, %p48
      %p50 = scmp.ne.s32.totalorder %s39, %s42
      %p51 = scmp.eq.s32.totalorder %s22, 3
      %p52 = por %p50, %p51
      %p53 = scmp.ne.s32.totalorder %s42, %s43
      %p54 = scmp.eq.s32.totalorder %s22, 0
      %p55 = por %p53, %p54
      %p56 = scmp.ne.s32.totalorder %s42, %s43
      %p57 = scmp.eq.s32.totalorder %s23, 3
      %p58 = por %p56, %p57
      %p60 = scmp.ne.s32.totalorder %s43, %s59
      %p61 = scmp.eq.s32.totalorder %s23, 0
      %p62 = por %p60, %p61
      %s63 = ssub.s32 %s25, %s32
      %s64 = ssub.s32 %s24, %s36
      %s65 = sor.u32 %s63, %s64
      %p66 = scmp.eq.s32.totalorder %s65, 0
      %s68 = sadd.s32 %s67, 1
      %s69 = scalar_select %p66, %s67, %s68
      %p72 = pneg %p66
      %p73 = scmp.eq.s32.totalorder %s17, 3
      %p74 = por %p72, %p73
      %p75 = scmp.ne.s32.totalorder %s67, %s70
      %p76 = scmp.eq.s32.totalorder %s17, 0
      %p77 = por %p75, %p76
      %p78 = scmp.ne.s32.totalorder %s67, %s70
      %p79 = scmp.eq.s32.totalorder %s22, 3
      %p80 = por %p78, %p79
      %p81 = scmp.ne.s32.totalorder %s70, %s71
      %p82 = scmp.eq.s32.totalorder %s22, 0
      %p83 = por %p81, %p82
      %p84 = scmp.ne.s32.totalorder %s70, %s71
      %p85 = scmp.eq.s32.totalorder %s23, 3
      %p86 = por %p84, %p85
      %p88 = scmp.ne.s32.totalorder %s71, %s87
      %p89 = scmp.eq.s32.totalorder %s23, 0
      %p90 = por %p88, %p89
      %s91 = ssub.s32 %s25, %s32
      %s92 = ssub.s32 %s24, %s36
      %s93 = sor.u32 %s91, %s92
      %p94 = scmp.eq.s32.totalorder %s93, 0
      %s96 = sadd.s32 %s95, 1
      %s97 = scalar_select %p94, %s95, %s96
      %p100 = pneg %p94
      %p101 = scmp.eq.s32.totalorder %s17, 3
      %p102 = por %p100, %p101
      %p103 = scmp.ne.s32.totalorder %s95, %s98
      %p104 = scmp.eq.s32.totalorder %s17, 0
      %p105 = por %p103, %p104
      %p106 = scmp.ne.s32.totalorder %s95, %s98
      %p107 = scmp.eq.s32.totalorder %s22, 3
      %p108 = por %p106, %p107
      %p109 = scmp.ne.s32.totalorder %s98, %s99
      %p110 = scmp.eq.s32.totalorder %s22, 0
      %p111 = por %p109, %p110
      %p112 = scmp.ne.s32.totalorder %s98, %s99
      %p113 = scmp.eq.s32.totalorder %s23, 3
      %p114 = por %p112, %p113
      %p116 = scmp.ne.s32.totalorder %s99, %s115
      %p117 = scmp.eq.s32.totalorder %s23, 0
      %p118 = por %p116, %p117
      %p119 = scmp.le.s32.totalorder 1, %s17
      %p120 = scmp.lt.s32.totalorder %s17, 5
      %p121 = pnand %p119, %p120
      %p122 = pneg %p121
      // Predicated region
      $region9: #{tpu_custom_call.1} parent=5 // pred_check
        _
      $region10: #{tpu_custom_call.1} parent=5 // pred_check_branch
        %124 = sbr.rel (%p121) target = $region12
      $region11: #{tpu_custom_call.1} parent=5 // pred_region
        %s125 = ssub.s32 %s17, 1
      $region12: #{tpu_custom_call.1} parent=5 // pred_fallthru
        _
      %p126 = scmp.lt.s32.totalorder %s17, 4
      // Predicated region
      $region13: #{tpu_custom_call.1} parent=5 // pred_check
        %p127 = pneg %p126
      $region14: #{tpu_custom_call.1} parent=5 // pred_check_branch
        %129 = sbr.rel (%p127) target = $region16
      $region15: #{tpu_custom_call.1} parent=5 // pred_region
        // Predicated region
        $region17: #{tpu_custom_call.1} parent=15 // pred_check
          %p130 = pneg %p49
        $region18: #{tpu_custom_call.1} parent=15 // pred_check_branch
          %132 = sbr.rel (%p130) target = $region20
        $region19: #{tpu_custom_call.1} parent=15 // pred_region
          %s133 = sand.u32 %s39, 1
          %s134 = scalar_lea.sflag [#allocation3], %s133
          %s135 = sand.u32 %s39, 1
          %s136 = smul.addr %s135, 32
          %s137 = scalar_lea.vmem [#allocation2], %s136
          %s138 = smul.u32 4, %s24
          %s140 = ssub.s32 512, 512
          %141 = vsyncadd %s134, %s140
          %s142 = smul.addr %s138, 128
          %s143 = scalar_lea.hbm %s0, %s142
          %s144 = sshll.u32 %s137, 4
          %s145 = int_to_ptr.vmem [resolvable:$true] %s144
          %150 = dma.hbm_to_vmem [thread:$0]  %s143, 512, %s145, %s134, 128, 128, 8
        $region20: #{tpu_custom_call.1} parent=15 // pred_fallthru
          _
        // Predicated region
        $region21: #{tpu_custom_call.1} parent=15 // pred_check
          %p151 = pneg %p77
        $region22: #{tpu_custom_call.1} parent=15 // pred_check_branch
          %153 = sbr.rel (%p151) target = $region24
        $region23: #{tpu_custom_call.1} parent=15 // pred_region
          %s154 = sand.u32 %s67, 1
          %s155 = scalar_lea.sflag [#allocation6], %s154
          %s156 = sand.u32 %s67, 1
          %s157 = smul.addr %s156, 32
          %s158 = scalar_lea.vmem [#allocation5], %s157
          %s159 = smul.u32 4, %s24
          %s161 = ssub.s32 512, 512
          %162 = vsyncadd %s155, %s161
          %s163 = smul.addr %s25, 8
          %s164 = sadd.s32 %s159, %s163
          %s165 = smul.addr %s164, 128
          %s166 = scalar_lea.hbm %s1, %s165
          %s167 = sshll.u32 %s158, 4
          %s168 = int_to_ptr.vmem [resolvable:$true] %s167
          %173 = dma.hbm_to_vmem [thread:$0]  %s166, 512, %s168, %s155, 128, 128, 8
        $region24: #{tpu_custom_call.1} parent=15 // pred_fallthru
          _
      $region16: #{tpu_custom_call.1} parent=5 // pred_fallthru
        _
      %p174 = scmp.le.s32.totalorder 1, %s17
      %p175 = scmp.lt.s32.totalorder %s17, 5
      %p176 = pnand %p174, %p175
      %p177 = pneg %p176
      // Predicated region
      $region25: #{tpu_custom_call.1} parent=5 // pred_check
        _
      $region26: #{tpu_custom_call.1} parent=5 // pred_check_branch
        %179 = sbr.rel (%p176) target = $region28
      $region27: #{tpu_custom_call.1} parent=5 // pred_region
        %s180 = ssub.s32 %s17, 1
        %s181 = sand.u32 %s42, 1
        %s182 = scalar_lea.sflag [#allocation3], %s181
        %s183 = sand.u32 %s42, 1
        %s184 = smul.addr %s183, 32
        %s185 = scalar_lea.vmem [#allocation2], %s184
        // Predicated region
        $region29: #{tpu_custom_call.1} parent=27 // pred_check
          %p186 = pneg %p55
        $region30: #{tpu_custom_call.1} parent=27 // pred_check_branch
          %188 = sbr.rel (%p186) target = $region32
        $region31: #{tpu_custom_call.1} parent=27 // pred_region
          %189 = dma.done %s182, 512
        $region32: #{tpu_custom_call.1} parent=27 // pred_fallthru
          _
        %s190 = sand.u32 %s70, 1
        %s191 = scalar_lea.sflag [#allocation6], %s190
        %s192 = sand.u32 %s70, 1
        %s193 = smul.addr %s192, 32
        %s194 = scalar_lea.vmem [#allocation5], %s193
        // Predicated region
        $region33: #{tpu_custom_call.1} parent=27 // pred_check
          %p195 = pneg %p83
        $region34: #{tpu_custom_call.1} parent=27 // pred_check_branch
          %197 = sbr.rel (%p195) target = $region36
        $region35: #{tpu_custom_call.1} parent=27 // pred_region
          %198 = dma.done %s191, 512
        $region36: #{tpu_custom_call.1} parent=27 // pred_fallthru
          _
        %s199 = sand.u32 %s42, 1
        %s200 = scalar_lea.sflag [#allocation3], %s199
        %s201 = sand.u32 %s42, 1
        %s202 = smul.addr %s201, 32
        %s203 = scalar_lea.vmem [#allocation2], %s202
        %p204 = pneg %p55
        %p205 = pneg %p52
        %s206 = sand.u32 %s70, 1
        %s207 = scalar_lea.sflag [#allocation6], %s206
        %s208 = sand.u32 %s70, 1
        %s209 = smul.addr %s208, 32
        %s210 = scalar_lea.vmem [#allocation5], %s209
        %p211 = pneg %p83
        %p212 = pneg %p80
        %p213 = pneg %p111
        %p214 = pneg %p108
        %s215 = sand.u32 %s98, 1
        %s216 = scalar_lea.sflag [#allocation4], %s215
        %s217 = sand.u32 %s98, 1
        %s218 = smul.addr %s217, 32
        %s219 = scalar_lea.vmem [#allocation7], %s218
        %s220 = smul.u32 4, %s26
        %s221 = smul.u32 4, %s26
        %s222 = smul.u32 4, %s26
        %v223 = vld [vmem:[%s194] sm:$0xff]
        %v224 = vld [vmem:[%s194 + $0x8] sm:$0xff]
        %v225 = vld [vmem:[%s194 + $0x10] sm:$0xff]
        %v226 = vld [vmem:[%s194 + $0x18] sm:$0xff]
        %v227 = vld [vmem:[%s185] sm:$0xff]
        %v228 = vld [vmem:[%s185 + $0x8] sm:$0xff]
        %v229 = vld [vmem:[%s185 + $0x10] sm:$0xff]
        %v230 = vld [vmem:[%s185 + $0x18] sm:$0xff]
        %v231 = vadd.f32 %v223, %v227
        %v232 = vadd.f32 %v224, %v228
        %v233 = vadd.f32 %v225, %v229
        %v234 = vadd.f32 %v226, %v230
        %235 = vst [vmem:[%s219] sm:$0xff] %v231
        %236 = vst [vmem:[%s219 + $0x8] sm:$0xff] %v232
        %237 = vst [vmem:[%s219 + $0x10] sm:$0xff] %v233
        %238 = vst [vmem:[%s219 + $0x18] sm:$0xff] %v234
        %s239 = sand.u32 %s98, 1
        %s240 = scalar_lea.sflag [#allocation4], %s239
        %s241 = sand.u32 %s98, 1
        %s242 = smul.addr %s241, 32
        %s243 = scalar_lea.vmem [#allocation7], %s242
        // Predicated region
        $region37: #{tpu_custom_call.1} parent=27 // pred_check
          %p244 = pneg %p108
        $region38: #{tpu_custom_call.1} parent=27 // pred_check_branch
          %246 = sbr.rel (%p244) target = $region40
        $region39: #{tpu_custom_call.1} parent=27 // pred_region
          %s247 = smul.u32 4, %s26
          %s249 = ssub.s32 512, 512
          %250 = vsyncadd %s240, %s249
          %s251 = smul.addr %s27, 8
          %s252 = sadd.s32 %s247, %s251
          %s253 = smul.addr %s252, 128
          %s254 = scalar_lea.hbm %s2, %s253
          %s255 = sshll.u32 %s243, 4
          %s256 = int_to_ptr.vmem [resolvable:$true] %s255
          %261 = dma.vmem_to_hbm [thread:$0]  %s256, 512, %s254, %s240, 128, 128, 8
        $region40: #{tpu_custom_call.1} parent=27 // pred_fallthru
          _
      $region28: #{tpu_custom_call.1} parent=5 // pred_fallthru
        _
      %p262 = scmp.le.s32.totalorder 2, %s17
      // Predicated region
      $region41: #{tpu_custom_call.1} parent=5 // pred_check
        %p263 = pneg %p262
      $region42: #{tpu_custom_call.1} parent=5 // pred_check_branch
        %265 = sbr.rel (%p263) target = $region44
      $region43: #{tpu_custom_call.1} parent=5 // pred_region
        %s266 = ssub.s32 %s17, 2
        // Predicated region
        $region45: #{tpu_custom_call.1} parent=43 // pred_check
          %p267 = pneg %p114
        $region46: #{tpu_custom_call.1} parent=43 // pred_check_branch
          %269 = sbr.rel (%p267) target = $region48
        $region47: #{tpu_custom_call.1} parent=43 // pred_region
          %s270 = sand.u32 %s99, 1
          %s271 = scalar_lea.sflag [#allocation4], %s270
          %s272 = sand.u32 %s99, 1
          %s273 = smul.addr %s272, 32
          %s274 = scalar_lea.vmem [#allocation7], %s273
          %275 = dma.done %s271, 512
        $region48: #{tpu_custom_call.1} parent=43 // pred_fallthru
          _
      $region44: #{tpu_custom_call.1} parent=5 // pred_fallthru
        _
    $region6: #{tpu_custom_call.1} parent=1 // loop_footer
      %s21 = sadd.s32 1, %s17
    $region7: #{tpu_custom_call.1} parent=1 // loop_footer_branch
      %16 = sbr.rel target = $region3
    $region8: #{tpu_custom_call.1} parent=1 // loop_exit
      _
    %276 = vsyncpa [#allocation3], 1
    %s277 = scalar_lea.sflag [#allocation3], 1
    %278 = vsyncpa %s277, 1
    %279 = vsyncpa [#allocation6], 1
    %s280 = scalar_lea.sflag [#allocation6], 1
    %281 = vsyncpa %s280, 1
    %282 = vsyncpa [#allocation4], 1
    %s283 = scalar_lea.sflag [#allocation4], 1
    %284 = vsyncpa %s283, 1

</llo_original>
